<compile_context>
chip_gen: v7x
topology: tpu7x:2x2x1
jax: 0.10.0
libtpu: 0.0.40
codegen_flags: <defaults>
</compile_context>

<pallas_src>
import functools

import jax
import jax.numpy as jnp
from jax.experimental import pallas as pl
from jax.experimental.pallas import tpu as pltpu


def _round_up(x, m):
    return ((x + m - 1) // m) * m


def _choose_batch_tile(B, max_tile=512):
    """Multiple of 8, <= max_tile, >=2 grid steps when possible, <~12.5% pad."""
    bt_cap = min(max_tile, _round_up(max(B, 1), 8))
    if B <= 16:
        return bt_cap
    # at least two grid steps so ('parallel',) can use both v7x TensorCores
    bt = min(bt_cap, _round_up((B + 1) // 2, 8))
    # shrink until batch-padding waste is <= ~12.5% of B
    while bt > 8 and (_round_up(B, bt) - B) * 8 > B:
        bt -= 8
    return max(bt, 8)


def _zinb_decoder_kernel(
    z_ref,
    w1_ref, b1_ref,
    w2_ref, b2_ref,
    w3_ref, b3_ref,
    wh1_ref, bh1_ref,
    wm2_ref, bm2_ref,
    wt2_ref, bt2_ref,
    wz2_ref, bz2_ref,
    out_ref,
    *, h3p, odp,
):
    f32 = jnp.float32

    # trunk: fc1 -> relu -> fc2 -> relu -> fc3 -> relu
    x = jnp.dot(z_ref[...], w1_ref[...], preferred_element_type=f32)
    x = jnp.maximum(x + b1_ref[...], 0.0)
    x = jnp.dot(x, w2_ref[...], preferred_element_type=f32)
    x = jnp.maximum(x + b2_ref[...], 0.0)
    x = jnp.dot(x, w3_ref[...], preferred_element_type=f32)
    x = jnp.maximum(x + b3_ref[...], 0.0)

    # fused head fc1: column layout [mu | theta | zi], each head padded to h3p
    h = jnp.dot(x, wh1_ref[...], preferred_element_type=f32) + bh1_ref[...]

    def softplus(v):
        # numerically stable softplus (EUP exp + log1p)
        return jnp.maximum(v, 0.0) + jnp.log1p(jnp.exp(-jnp.abs(v)))

    # per-head fc2 + epilogue; all column slices are static 128-lane slabs.
    mu = jnp.dot(h[:, 0 * h3p:1 * h3p], wm2_ref[...],
                 preferred_element_type=f32) + bm2_ref[...]
    out_ref[:, 0 * odp:1 * odp] = softplus(mu)

    th = jnp.dot(h[:, 1 * h3p:2 * h3p], wt2_ref[...],
                 preferred_element_type=f32) + bt2_ref[...]
    out_ref[:, 1 * odp:2 * odp] = softplus(th)

    zi = jnp.dot(h[:, 2 * h3p:3 * h3p], wz2_ref[...],
                 preferred_element_type=f32) + bz2_ref[...]
    out_ref[:, 2 * odp:3 * odp] = zi * 10.0 + 4.0


def fuse_params(params):
    """One-time parameter prep: fuse the three head fc1s into one wide matmul
    and pad every head dimension to a 128-lane multiple (zero padding, exact).

    Returns (fused_params_tuple, meta_dict)."""
    (w1, b1, w2, b2, w3, b3,
     wm1, bm1, wm2, bm2,
     wt1, bt1, wt2, bt2,
     wz1, bz1, wz2, bz2) = params

    h3 = wm2.shape[0]           # layers_dims[3]
    out_dim = wm2.shape[1]
    h3p = _round_up(h3, 128)    # per-head fc1 width, padded to lane multiple
    odp = _round_up(out_dim, 128)  # per-head output width, padded

    def pad_cols(a, n):
        return jnp.pad(a, ((0, 0), (0, n - a.shape[1])))

    def pad_2d(a, r, c):
        return jnp.pad(a, ((0, r - a.shape[0]), (0, c - a.shape[1])))

    # fused head fc1: (h2, 3*h3p), column order [mu | theta | zi]
    wh1 = jnp.concatenate(
        [pad_cols(wm1, h3p), pad_cols(wt1, h3p), pad_cols(wz1, h3p)], axis=1)
    bh1 = jnp.concatenate(
        [pad_cols(bm1, h3p), pad_cols(bt1, h3p), pad_cols(bz1, h3p)], axis=1)

    # per-head fc2, padded to (h3p, odp); padding rows/cols are exact zeros
    wm2p, bm2p = pad_2d(wm2, h3p, odp), pad_cols(bm2, odp)
    wt2p, bt2p = pad_2d(wt2, h3p, odp), pad_cols(bt2, odp)
    wz2p, bz2p = pad_2d(wz2, h3p, odp), pad_cols(bz2, odp)

    fused = (w1, b1, w2, b2, w3, b3,
             wh1, bh1,
             wm2p, bm2p, wt2p, bt2p, wz2p, bz2p)
    meta = {"latent_dim": w1.shape[0], "out_dim": out_dim,
            "h3p": h3p, "odp": odp}
    return fused, meta


def zinb_decoder_forward(z, fused_params, meta, *, max_batch_tile=512):
    """ZINB decoder forward from fused params. Returns (mu, theta, zi_logits)."""
    B, latent_dim = z.shape
    out_dim = meta["out_dim"]
    h3p = meta["h3p"]
    odp = meta["odp"]

    # --- adaptive batch tiling ---
    bt = _choose_batch_tile(B, max_batch_tile)
    Bp = _round_up(B, bt)
    if Bp != B:
        z = jnp.pad(z, ((0, Bp - B), (0, 0)))
    grid = (Bp // bt,)

    weights = fused_params
    in_specs = [pl.BlockSpec((bt, latent_dim), lambda i: (i, 0))]
    # constant-index weight blocks: fetched once, revisited every grid step
    in_specs += [pl.BlockSpec(w.shape, lambda i: (0, 0)) for w in weights]
    out_spec = pl.BlockSpec((bt, 3 * odp), lambda i: (i, 0))

    # advisory cost hint + explicit VMEM budget (valid on v5e/v6e/v7x)
    h0 = weights[0].shape[1]
    h1 = weights[2].shape[1]
    h2 = weights[4].shape[1]
    bytes_of = lambda a: int(a.size) * a.dtype.itemsize
    weight_bytes = sum(bytes_of(w) for w in weights)
    macs = (latent_dim * h0 + h0 * h1 + h1 * h2
            + h2 * (3 * h3p) + 3 * h3p * odp)
    cost = pl.CostEstimate(
        flops=int(2 * Bp * macs),
        transcendentals=int(2 * Bp * 2 * odp),          # exp + log1p, 2 heads
        bytes_accessed=int(4 * Bp * (latent_dim + 3 * odp) + weight_bytes),
    )
    io_block_bytes = 4 * bt * (latent_dim + 3 * odp)
    vmem_limit = int(min(64 * 1024 * 1024,
                         max(16 * 1024 * 1024,
                             2 * weight_bytes + 4 * io_block_bytes + (4 << 20))))

    out = pl.pallas_call(
        functools.partial(_zinb_decoder_kernel, h3p=h3p, odp=odp),
        out_shape=jax.ShapeDtypeStruct((Bp, 3 * odp), jnp.float32),
        grid=grid,
        in_specs=in_specs,
        out_specs=out_spec,
        compiler_params=pltpu.CompilerParams(
            dimension_semantics=("parallel",),
            vmem_limit_bytes=vmem_limit),
        cost_estimate=cost,
    )(z, *weights)

    # slice off batch padding and per-head lane padding
    mu = out[:B, 0 * odp:0 * odp + out_dim]
    theta = out[:B, 1 * odp:1 * odp + out_dim]
    zi_logits = out[:B, 2 * odp:2 * odp + out_dim]
    return mu, theta, zi_logits


def init_params(key, latent_dim, layers_dims, output_dim):
    """Deterministic synthetic parameters.

    Weights are (in_features, out_features); biases are (1, out_features)."""
    dims = [
        (latent_dim, layers_dims[0]),      # fc1
        (layers_dims[0], layers_dims[1]),  # fc2
        (layers_dims[1], layers_dims[2]),  # fc3
        (layers_dims[2], layers_dims[3]),  # mu_fc1
        (layers_dims[3], output_dim),      # mu_fc2
        (layers_dims[2], layers_dims[3]),  # theta_fc1
        (layers_dims[3], output_dim),      # theta_fc2
        (layers_dims[2], layers_dims[3]),  # zi_logits_fc1
        (layers_dims[3], output_dim),      # zi_logits_fc2
    ]
    params = []
    keys = jax.random.split(key, 2 * len(dims))
    for i, (fan_in, fan_out) in enumerate(dims):
        bound = 1.0 / jnp.sqrt(fan_in)
        w = jax.random.uniform(keys[2 * i], (fan_in, fan_out),
                               minval=-bound, maxval=bound, dtype=jnp.float32)
        b = jax.random.uniform(keys[2 * i + 1], (1, fan_out),
                               minval=-bound, maxval=bound, dtype=jnp.float32)
        params.extend([w, b])
    return tuple(params)


def reference_forward(z, params):
    """Pure-JAX reference of the (unfused, unpadded) original module math."""
    (w1, b1, w2, b2, w3, b3,
     wm1, bm1, wm2, bm2,
     wt1, bt1, wt2, bt2,
     wz1, bz1, wz2, bz2) = params
    x = jax.nn.relu(z @ w1 + b1)
    x = jax.nn.relu(x @ w2 + b2)
    x = jax.nn.relu(x @ w3 + b3)
    mu = jax.nn.softplus((x @ wm1 + bm1) @ wm2 + bm2)
    theta = jax.nn.softplus((x @ wt1 + bt1) @ wt2 + bt2)
    zi = ((x @ wz1 + bz1) @ wz2 + bz2) * 10.0 + 4.0
    return mu, theta, zi


if __name__ == "__main__":
    # Small shapes consistent with the module: latent -> hidden trunk -> 3 heads.
    latent_dim = 32
    layers_dims = [64, 64, 64, 32]
    output_dim = 16
    batch = 16

    key = jax.random.PRNGKey(0)
    k_z, k_p = jax.random.split(key)
    z = jax.random.normal(k_z, (batch, latent_dim), dtype=jnp.float32)
    params = init_params(k_p, latent_dim, layers_dims, output_dim)

    # one-time parameter fusion/padding (hoisted out of the per-call path)
    fused, meta = fuse_params(params)
    fused = jax.block_until_ready(fused)

    mu, theta, zi_logits = jax.block_until_ready(
        zinb_decoder_forward(z, fused, meta))

    # cross-check against a pure-JAX reference of the same math
    mu_r, theta_r, zi_r = reference_forward(z, params)
    assert jnp.allclose(mu, mu_r, atol=1e-5, rtol=1e-5)
    assert jnp.allclose(theta, theta_r, atol=1e-5, rtol=1e-5)
    assert jnp.allclose(zi_logits, zi_r, atol=1e-4, rtol=1e-5)

    # TODO(synk): the torch forward wraps (mu, theta, zi_logits) in a
    # ZeroInflatedNegativeBinomial distribution object (validate_args=True);
    # the kernel returns the distribution parameters directly (== full_decode()).
    print("KERNEL_OK")
</pallas_src>

<mosaic_0001>
module attributes {stable_mosaic.version = 11 : i64} {
  func.func @_zinb_decoder_kernel(%arg0: i32, %arg1: memref<16x32xf32, #tpu.memory_space<vmem>>, %arg2: memref<32x64xf32, #tpu.memory_space<vmem>>, %arg3: memref<1x64xf32, #tpu.memory_space<vmem>>, %arg4: memref<64x64xf32, #tpu.memory_space<vmem>>, %arg5: memref<1x64xf32, #tpu.memory_space<vmem>>, %arg6: memref<64x64xf32, #tpu.memory_space<vmem>>, %arg7: memref<1x64xf32, #tpu.memory_space<vmem>>, %arg8: memref<64x384xf32, #tpu.memory_space<vmem>>, %arg9: memref<1x384xf32, #tpu.memory_space<vmem>>, %arg10: memref<128x128xf32, #tpu.memory_space<vmem>>, %arg11: memref<1x128xf32, #tpu.memory_space<vmem>>, %arg12: memref<128x128xf32, #tpu.memory_space<vmem>>, %arg13: memref<1x128xf32, #tpu.memory_space<vmem>>, %arg14: memref<128x128xf32, #tpu.memory_space<vmem>>, %arg15: memref<1x128xf32, #tpu.memory_space<vmem>>, %arg16: memref<16x384xf32, #tpu.memory_space<vmem>>) attributes {dimension_semantics = [#tpu.dimension_semantics<parallel>], iteration_bounds = array<i64: 1>, scalar_prefetch = 0 : i64, scratch_operands = 0 : i64, tpu.core_type = #tpu.core_type<tc>, window_params = [{transform_indices = @transform_0, window_bounds = array<i64: 16, 32>}, {pipeline_mode = #tpu.pipeline_mode<synchronous>, transform_indices = @transform_1, window_bounds = array<i64: 32, 64>}, {pipeline_mode = #tpu.pipeline_mode<synchronous>, transform_indices = @transform_2, window_bounds = array<i64: 1, 64>}, {pipeline_mode = #tpu.pipeline_mode<synchronous>, transform_indices = @transform_3, window_bounds = array<i64: 64, 64>}, {pipeline_mode = #tpu.pipeline_mode<synchronous>, transform_indices = @transform_4, window_bounds = array<i64: 1, 64>}, {pipeline_mode = #tpu.pipeline_mode<synchronous>, transform_indices = @transform_5, window_bounds = array<i64: 64, 64>}, {pipeline_mode = #tpu.pipeline_mode<synchronous>, transform_indices = @transform_6, window_bounds = array<i64: 1, 64>}, {pipeline_mode = #tpu.pipeline_mode<synchronous>, transform_indices = @transform_7, window_bounds = array<i64: 64, 384>}, {pipeline_mode = #tpu.pipeline_mode<synchronous>, transform_indices = @transform_8, window_bounds = array<i64: 1, 384>}, {pipeline_mode = #tpu.pipeline_mode<synchronous>, transform_indices = @transform_9, window_bounds = array<i64: 128, 128>}, {pipeline_mode = #tpu.pipeline_mode<synchronous>, transform_indices = @transform_10, window_bounds = array<i64: 1, 128>}, {pipeline_mode = #tpu.pipeline_mode<synchronous>, transform_indices = @transform_11, window_bounds = array<i64: 128, 128>}, {pipeline_mode = #tpu.pipeline_mode<synchronous>, transform_indices = @transform_12, window_bounds = array<i64: 1, 128>}, {pipeline_mode = #tpu.pipeline_mode<synchronous>, transform_indices = @transform_13, window_bounds = array<i64: 128, 128>}, {pipeline_mode = #tpu.pipeline_mode<synchronous>, transform_indices = @transform_14, window_bounds = array<i64: 1, 128>}, {transform_indices = @transform_15, window_bounds = array<i64: 16, 384>}]} {
    %c0 = arith.constant 0 : index
    %c0_0 = arith.constant 0 : index
    %0 = vector.load %arg1[%c0, %c0_0] : memref<16x32xf32, #tpu.memory_space<vmem>>, vector<16x32xf32>
    %c0_1 = arith.constant 0 : index
    %c0_2 = arith.constant 0 : index
    %1 = vector.load %arg2[%c0_1, %c0_2] : memref<32x64xf32, #tpu.memory_space<vmem>>, vector<32x64xf32>
    %cst = arith.constant dense<0.000000e+00> : vector<16x64xf32>
    %2 = tpu.matmul %0, %1, %cst {dimension_numbers = #tpu.dot_dimension_numbers<[1], [0], [0], [1], [0, 0, 1, 1], [], []>} : vector<16x32xf32>, vector<32x64xf32>, vector<16x64xf32> -> vector<16x64xf32>
    %c0_3 = arith.constant 0 : index
    %c0_4 = arith.constant 0 : index
    %3 = vector.load %arg3[%c0_3, %c0_4] : memref<1x64xf32, #tpu.memory_space<vmem>>, vector<1x64xf32>
    %4 = vector.broadcast %3 : vector<1x64xf32> to vector<16x64xf32>
    %5 = arith.addf %2, %4 : vector<16x64xf32>
    %cst_5 = arith.constant 0.000000e+00 : f32
    %6 = vector.broadcast %cst_5 : f32 to vector<16x64xf32>
    %7 = arith.maximumf %5, %6 : vector<16x64xf32>
    %c0_6 = arith.constant 0 : index
    %c0_7 = arith.constant 0 : index
    %8 = vector.load %arg4[%c0_6, %c0_7] : memref<64x64xf32, #tpu.memory_space<vmem>>, vector<64x64xf32>
    %cst_8 = arith.constant dense<0.000000e+00> : vector<16x64xf32>
    %9 = tpu.matmul %7, %8, %cst_8 {dimension_numbers = #tpu.dot_dimension_numbers<[1], [0], [0], [1], [0, 0, 1, 1], [], []>} : vector<16x64xf32>, vector<64x64xf32>, vector<16x64xf32> -> vector<16x64xf32>
    %c0_9 = arith.constant 0 : index
    %c0_10 = arith.constant 0 : index
    %10 = vector.load %arg5[%c0_9, %c0_10] : memref<1x64xf32, #tpu.memory_space<vmem>>, vector<1x64xf32>
    %11 = vector.broadcast %10 : vector<1x64xf32> to vector<16x64xf32>
    %12 = arith.addf %9, %11 : vector<16x64xf32>
    %cst_11 = arith.constant 0.000000e+00 : f32
    %13 = vector.broadcast %cst_11 : f32 to vector<16x64xf32>
    %14 = arith.maximumf %12, %13 : vector<16x64xf32>
    %c0_12 = arith.constant 0 : index
    %c0_13 = arith.constant 0 : index
    %15 = vector.load %arg6[%c0_12, %c0_13] : memref<64x64xf32, #tpu.memory_space<vmem>>, vector<64x64xf32>
    %cst_14 = arith.constant dense<0.000000e+00> : vector<16x64xf32>
    %16 = tpu.matmul %14, %15, %cst_14 {dimension_numbers = #tpu.dot_dimension_numbers<[1], [0], [0], [1], [0, 0, 1, 1], [], []>} : vector<16x64xf32>, vector<64x64xf32>, vector<16x64xf32> -> vector<16x64xf32>
    %c0_15 = arith.constant 0 : index
    %c0_16 = arith.constant 0 : index
    %17 = vector.load %arg7[%c0_15, %c0_16] : memref<1x64xf32, #tpu.memory_space<vmem>>, vector<1x64xf32>
    %18 = vector.broadcast %17 : vector<1x64xf32> to vector<16x64xf32>
    %19 = arith.addf %16, %18 : vector<16x64xf32>
    %cst_17 = arith.constant 0.000000e+00 : f32
    %20 = vector.broadcast %cst_17 : f32 to vector<16x64xf32>
    %21 = arith.maximumf %19, %20 : vector<16x64xf32>
    %c0_18 = arith.constant 0 : index
    %c0_19 = arith.constant 0 : index
    %22 = vector.load %arg8[%c0_18, %c0_19] : memref<64x384xf32, #tpu.memory_space<vmem>>, vector<64x384xf32>
    %cst_20 = arith.constant dense<0.000000e+00> : vector<16x384xf32>
    %23 = tpu.matmul %21, %22, %cst_20 {dimension_numbers = #tpu.dot_dimension_numbers<[1], [0], [0], [1], [0, 0, 1, 1], [], []>} : vector<16x64xf32>, vector<64x384xf32>, vector<16x384xf32> -> vector<16x384xf32>
    %c0_21 = arith.constant 0 : index
    %c0_22 = arith.constant 0 : index
    %24 = vector.load %arg9[%c0_21, %c0_22] : memref<1x384xf32, #tpu.memory_space<vmem>>, vector<1x384xf32>
    %25 = vector.broadcast %24 : vector<1x384xf32> to vector<16x384xf32>
    %26 = arith.addf %23, %25 : vector<16x384xf32>
    %27 = vector.extract_strided_slice %26 {offsets = [0, 0], sizes = [16, 128], strides = [1, 1]} : vector<16x384xf32> to vector<16x128xf32>
    %c0_23 = arith.constant 0 : index
    %c0_24 = arith.constant 0 : index
    %28 = vector.load %arg10[%c0_23, %c0_24] : memref<128x128xf32, #tpu.memory_space<vmem>>, vector<128x128xf32>
    %cst_25 = arith.constant dense<0.000000e+00> : vector<16x128xf32>
    %29 = tpu.matmul %27, %28, %cst_25 {dimension_numbers = #tpu.dot_dimension_numbers<[1], [0], [0], [1], [0, 0, 1, 1], [], []>} : vector<16x128xf32>, vector<128x128xf32>, vector<16x128xf32> -> vector<16x128xf32>
    %c0_26 = arith.constant 0 : index
    %c0_27 = arith.constant 0 : index
    %30 = vector.load %arg11[%c0_26, %c0_27] : memref<1x128xf32, #tpu.memory_space<vmem>>, vector<1x128xf32>
    %31 = vector.broadcast %30 : vector<1x128xf32> to vector<16x128xf32>
    %32 = arith.addf %29, %31 : vector<16x128xf32>
    %cst_28 = arith.constant 0.000000e+00 : f32
    %33 = vector.broadcast %cst_28 : f32 to vector<16x128xf32>
    %34 = arith.maximumf %32, %33 : vector<16x128xf32>
    %35 = math.absf %32 : vector<16x128xf32>
    %cst_29 = arith.constant 0.000000e+00 : f32
    %36 = vector.broadcast %cst_29 : f32 to vector<16x128xf32>
    %37 = arith.subf %36, %35 : vector<16x128xf32>
    %38 = math.exp %37 : vector<16x128xf32>
    %39 = math.log1p %38 : vector<16x128xf32>
    %40 = arith.addf %34, %39 : vector<16x128xf32>
    %c0_30 = arith.constant 0 : index
    %c0_31 = arith.constant 0 : index
    %41 = vector.load %arg16[%c0_30, %c0_31] : memref<16x384xf32, #tpu.memory_space<vmem>>, vector<16x128xf32>
    tpu.vector_store %arg16[%c0_30, %c0_31], %40 {strides = array<i32>} : memref<16x384xf32, #tpu.memory_space<vmem>>, vector<16x128xf32>,
    %42 = vector.extract_strided_slice %26 {offsets = [0, 128], sizes = [16, 128], strides = [1, 1]} : vector<16x384xf32> to vector<16x128xf32>
    %c0_32 = arith.constant 0 : index
    %c0_33 = arith.constant 0 : index
    %43 = vector.load %arg12[%c0_32, %c0_33] : memref<128x128xf32, #tpu.memory_space<vmem>>, vector<128x128xf32>
    %cst_34 = arith.constant dense<0.000000e+00> : vector<16x128xf32>
    %44 = tpu.matmul %42, %43, %cst_34 {dimension_numbers = #tpu.dot_dimension_numbers<[1], [0], [0], [1], [0, 0, 1, 1], [], []>} : vector<16x128xf32>, vector<128x128xf32>, vector<16x128xf32> -> vector<16x128xf32>
    %c0_35 = arith.constant 0 : index
    %c0_36 = arith.constant 0 : index
    %45 = vector.load %arg13[%c0_35, %c0_36] : memref<1x128xf32, #tpu.memory_space<vmem>>, vector<1x128xf32>
    %46 = vector.broadcast %45 : vector<1x128xf32> to vector<16x128xf32>
    %47 = arith.addf %44, %46 : vector<16x128xf32>
    %cst_37 = arith.constant 0.000000e+00 : f32
    %48 = vector.broadcast %cst_37 : f32 to vector<16x128xf32>
    %49 = arith.maximumf %47, %48 : vector<16x128xf32>
    %50 = math.absf %47 : vector<16x128xf32>
    %cst_38 = arith.constant 0.000000e+00 : f32
    %51 = vector.broadcast %cst_38 : f32 to vector<16x128xf32>
    %52 = arith.subf %51, %50 : vector<16x128xf32>
    %53 = math.exp %52 : vector<16x128xf32>
    %54 = math.log1p %53 : vector<16x128xf32>
    %55 = arith.addf %49, %54 : vector<16x128xf32>
    %c0_39 = arith.constant 0 : index
    %c128 = arith.constant 128 : index
    %56 = vector.load %arg16[%c0_39, %c128] : memref<16x384xf32, #tpu.memory_space<vmem>>, vector<16x128xf32>
    tpu.vector_store %arg16[%c0_39, %c128], %55 {strides = array<i32>} : memref<16x384xf32, #tpu.memory_space<vmem>>, vector<16x128xf32>,
    %57 = vector.extract_strided_slice %26 {offsets = [0, 256], sizes = [16, 128], strides = [1, 1]} : vector<16x384xf32> to vector<16x128xf32>
    %c0_40 = arith.constant 0 : index
    %c0_41 = arith.constant 0 : index
    %58 = vector.load %arg14[%c0_40, %c0_41] : memref<128x128xf32, #tpu.memory_space<vmem>>, vector<128x128xf32>
    %cst_42 = arith.constant dense<0.000000e+00> : vector<16x128xf32>
    %59 = tpu.matmul %57, %58, %cst_42 {dimension_numbers = #tpu.dot_dimension_numbers<[1], [0], [0], [1], [0, 0, 1, 1], [], []>} : vector<16x128xf32>, vector<128x128xf32>, vector<16x128xf32> -> vector<16x128xf32>
    %c0_43 = arith.constant 0 : index
    %c0_44 = arith.constant 0 : index
    %60 = vector.load %arg15[%c0_43, %c0_44] : memref<1x128xf32, #tpu.memory_space<vmem>>, vector<1x128xf32>
    %61 = vector.broadcast %60 : vector<1x128xf32> to vector<16x128xf32>
    %62 = arith.addf %59, %61 : vector<16x128xf32>
    %cst_45 = arith.constant 1.000000e+01 : f32
    %63 = vector.broadcast %cst_45 : f32 to vector<16x128xf32>
    %64 = arith.mulf %62, %63 : vector<16x128xf32>
    %cst_46 = arith.constant 4.000000e+00 : f32
    %65 = vector.broadcast %cst_46 : f32 to vector<16x128xf32>
    %66 = arith.addf %64, %65 : vector<16x128xf32>
    %c0_47 = arith.constant 0 : index
    %c256 = arith.constant 256 : index
    %67 = vector.load %arg16[%c0_47, %c256] : memref<16x384xf32, #tpu.memory_space<vmem>>, vector<16x128xf32>
    tpu.vector_store %arg16[%c0_47, %c256], %66 {strides = array<i32>} : memref<16x384xf32, #tpu.memory_space<vmem>>, vector<16x128xf32>,
    return
  }
  func.func @transform_0(%arg0: i32) -> (i32, i32) {
    %c0_i32 = arith.constant 0 : i32
    %c0_i32_0 = arith.constant 0 : i32
    return %arg0, %c0_i32 : i32, i32
  }
  func.func @transform_1(%arg0: i32) -> (i32, i32) {
    %c0_i32 = arith.constant 0 : i32
    %c0_i32_0 = arith.constant 0 : i32
    %c0_i32_1 = arith.constant 0 : i32
    return %c0_i32, %c0_i32_0 : i32, i32
  }
  func.func @transform_2(%arg0: i32) -> (i32, i32) {
    %c0_i32 = arith.constant 0 : i32
    %c0_i32_0 = arith.constant 0 : i32
    %c0_i32_1 = arith.constant 0 : i32
    return %c0_i32, %c0_i32_0 : i32, i32
  }
  func.func @transform_3(%arg0: i32) -> (i32, i32) {
    %c0_i32 = arith.constant 0 : i32
    %c0_i32_0 = arith.constant 0 : i32
    %c0_i32_1 = arith.constant 0 : i32
    return %c0_i32, %c0_i32_0 : i32, i32
  }
  func.func @transform_4(%arg0: i32) -> (i32, i32) {
    %c0_i32 = arith.constant 0 : i32
    %c0_i32_0 = arith.constant 0 : i32
    %c0_i32_1 = arith.constant 0 : i32
    return %c0_i32, %c0_i32_0 : i32, i32
  }
  func.func @transform_5(%arg0: i32) -> (i32, i32) {
    %c0_i32 = arith.constant 0 : i32
    %c0_i32_0 = arith.constant 0 : i32
    %c0_i32_1 = arith.constant 0 : i32
    return %c0_i32, %c0_i32_0 : i32, i32
  }
  func.func @transform_6(%arg0: i32) -> (i32, i32) {
    %c0_i32 = arith.constant 0 : i32
    %c0_i32_0 = arith.constant 0 : i32
    %c0_i32_1 = arith.constant 0 : i32
    return %c0_i32, %c0_i32_0 : i32, i32
  }
  func.func @transform_7(%arg0: i32) -> (i32, i32) {
    %c0_i32 = arith.constant 0 : i32
    %c0_i32_0 = arith.constant 0 : i32
    %c0_i32_1 = arith.constant 0 : i32
    return %c0_i32, %c0_i32_0 : i32, i32
  }
  func.func @transform_8(%arg0: i32) -> (i32, i32) {
    %c0_i32 = arith.constant 0 : i32
    %c0_i32_0 = arith.constant 0 : i32
    %c0_i32_1 = arith.constant 0 : i32
    return %c0_i32, %c0_i32_0 : i32, i32
  }
  func.func @transform_9(%arg0: i32) -> (i32, i32) {
    %c0_i32 = arith.constant 0 : i32
    %c0_i32_0 = arith.constant 0 : i32
    %c0_i32_1 = arith.constant 0 : i32
    return %c0_i32, %c0_i32_0 : i32, i32
  }
  func.func @transform_10(%arg0: i32) -> (i32, i32) {
    %c0_i32 = arith.constant 0 : i32
    %c0_i32_0 = arith.constant 0 : i32
    %c0_i32_1 = arith.constant 0 : i32
    return %c0_i32, %c0_i32_0 : i32, i32
  }
  func.func @transform_11(%arg0: i32) -> (i32, i32) {
    %c0_i32 = arith.constant 0 : i32
    %c0_i32_0 = arith.constant 0 : i32
    %c0_i32_1 = arith.constant 0 : i32
    return %c0_i32, %c0_i32_0 : i32, i32
  }
  func.func @transform_12(%arg0: i32) -> (i32, i32) {
    %c0_i32 = arith.constant 0 : i32
    %c0_i32_0 = arith.constant 0 : i32
    %c0_i32_1 = arith.constant 0 : i32
    return %c0_i32, %c0_i32_0 : i32, i32
  }
  func.func @transform_13(%arg0: i32) -> (i32, i32) {
    %c0_i32 = arith.constant 0 : i32
    %c0_i32_0 = arith.constant 0 : i32
    %c0_i32_1 = arith.constant 0 : i32
    return %c0_i32, %c0_i32_0 : i32, i32
  }
  func.func @transform_14(%arg0: i32) -> (i32, i32) {
    %c0_i32 = arith.constant 0 : i32
    %c0_i32_0 = arith.constant 0 : i32
    %c0_i32_1 = arith.constant 0 : i32
    return %c0_i32, %c0_i32_0 : i32, i32
  }
  func.func @transform_15(%arg0: i32) -> (i32, i32) {
    %c0_i32 = arith.constant 0 : i32
    %c0_i32_0 = arith.constant 0 : i32
    return %arg0, %c0_i32 : i32, i32
  }
}

</mosaic_0001>

<llo_original>
// kernel: tpu_custom_call.1
$region0: #{tpu_custom_call.1}
  #allocation0 [shape = 'u32[]', space=smem, size = 0x4, offset = 0x4, fixed_abs, tag = 'smem constant byte address 0x4 - core index']
  #allocation1 [shape = 'u32[144,128]{1,0:T(1,128)}', space=vmem, size = 0x12000, scoped, tag = 'internal scratch']
  %s0 = inlined_call_operand.hbm [shape: f32[16,32], index: 0, kind: input, shape index: {}]
  %s1 = inlined_call_operand.hbm [shape: f32[32,64], index: 1, kind: input, shape index: {}]
  %s2 = inlined_call_operand.vmem [shape: f32[1,64], index: 2, kind: input, shape index: {}]
  %s3 = inlined_call_operand.hbm [shape: f32[64,64], index: 3, kind: input, shape index: {}]
  %s4 = inlined_call_operand.vmem [shape: f32[1,64], index: 4, kind: input, shape index: {}]
  %s5 = inlined_call_operand.hbm [shape: f32[64,64], index: 5, kind: input, shape index: {}]
  %s6 = inlined_call_operand.vmem [shape: f32[1,64], index: 6, kind: input, shape index: {}]
  %s7 = inlined_call_operand.hbm [shape: f32[64,384], index: 7, kind: input, shape index: {}]
  %s8 = inlined_call_operand.vmem [shape: f32[1,384], index: 8, kind: input, shape index: {}]
  %s9 = inlined_call_operand.hbm [shape: f32[128,128], index: 9, kind: input, shape index: {}]
  %s10 = inlined_call_operand.vmem [shape: f32[1,128], index: 10, kind: input, shape index: {}]
  %s11 = inlined_call_operand.hbm [shape: f32[128,128], index: 11, kind: input, shape index: {}]
  %s12 = inlined_call_operand.vmem [shape: f32[1,128], index: 12, kind: input, shape index: {}]
  %s13 = inlined_call_operand.hbm [shape: f32[128,128], index: 13, kind: input, shape index: {}]
  %s14 = inlined_call_operand.vmem [shape: f32[1,128], index: 14, kind: input, shape index: {}]
  %s15 = inlined_call_operand.hbm [shape: f32[16,384], index: 15, kind: output, shape index: {}]
  %s16 = sld [smem:[#allocation0]]
  $region102: #{tpu_custom_call.1} parent=0
    _
  %s18 = ssub.s32 1, %s16
  %s19 = scalar_select 0, %s18, %s16
  $region1: #{tpu_custom_call.1} parent=0
    #allocation2 [shape = 'u8[8192]{0}', space=vmem, size = 0x2000, scoped, tag = 'input window, operand 0, single buffered']
    #allocation3 [shape = 's32[1]{0}', space=sflag, size = 0x4, scoped, tag = 'scoped memory for tpu_custom_call.1']
    #allocation4 [shape = 's32[1]{0}', space=sflag, size = 0x4, scoped, tag = 'scoped memory for tpu_custom_call.1']
    #allocation5 [shape = 'u8[16384]{0}', space=vmem, size = 0x4000, scoped, tag = 'input window, operand 1, single buffered']
    #allocation6 [shape = 's32[1]{0}', space=sflag, size = 0x4, scoped, tag = 'scoped memory for tpu_custom_call.1']
    #allocation7 [shape = 'u8[32768]{0}', space=vmem, size = 0x8000, scoped, tag = 'input window, operand 3, single buffered']
    #allocation8 [shape = 'u8[32768]{0}', space=vmem, size = 0x8000, scoped, tag = 'input window, operand 5, single buffered']
    #allocation9 [shape = 's32[1]{0}', space=sflag, size = 0x4, scoped, tag = 'scoped memory for tpu_custom_call.1']
    #allocation10 [shape = 'u8[98304]{0}', space=vmem, size = 0x18000, scoped, tag = 'input window, operand 7, single buffered']
    #allocation11 [shape = 'u8[65536]{0}', space=vmem, size = 0x10000, scoped, tag = 'input window, operand 9, single buffered']
    #allocation12 [shape = 's32[1]{0}', space=sflag, size = 0x4, scoped, tag = 'scoped memory for tpu_custom_call.1']
    #allocation13 [shape = 'u8[65536]{0}', space=vmem, size = 0x10000, scoped, tag = 'input window, operand 11, single buffered']
    #allocation14 [shape = 'u8[65536]{0}', space=vmem, size = 0x10000, scoped, tag = 'input window, operand 13, single buffered']
    #allocation15 [shape = 's32[1]{0}', space=sflag, size = 0x4, scoped, tag = 'scoped memory for tpu_custom_call.1']
    #allocation16 [shape = 'u8[24576]{0}', space=vmem, size = 0x6000, scoped, tag = 'output window, operand 0, single buffered']
    %20 = vsyncpa [#allocation3], 0
    %21 = vsyncpa [#allocation6], 0
    %22 = vsyncpa [#allocation9], 0
    %23 = vsyncpa [#allocation12], 0
    %24 = vsyncpa [#allocation15], 0
    %25 = vsyncpa [#allocation4], 0
    // Predicated region
    $region2: #{tpu_custom_call.1} parent=1 // pred_check
      _
    $region3: #{tpu_custom_call.1} parent=1 // pred_check_branch
      %27 = sbr.rel (0) target = $region5
    $region4: #{tpu_custom_call.1} parent=1 // pred_region
      %s29 = ssub.s32 256, 256
      %30 = vsyncadd [#allocation3], %s29
      %s31 = sshll.u32 [#allocation2], 4
      %s32 = int_to_ptr.vmem [resolvable:$true] %s31
      %37 = dma.hbm_to_vmem [thread:$0]  %s0, 256, %s32, [#allocation3], 128, 128, 8
    $region5: #{tpu_custom_call.1} parent=1 // pred_fallthru
      _
    // Predicated region
    $region6: #{tpu_custom_call.1} parent=1 // pred_check
      _
    $region7: #{tpu_custom_call.1} parent=1 // pred_check_branch
      %39 = sbr.rel (0) target = $region9
    $region8: #{tpu_custom_call.1} parent=1 // pred_region
      %s41 = ssub.s32 512, 512
      %42 = vsyncadd [#allocation6], %s41
      %s43 = sshll.u32 [#allocation5], 4
      %s44 = int_to_ptr.vmem [resolvable:$true] %s43
      %49 = dma.hbm_to_vmem [thread:$0]  %s1, 512, %s44, [#allocation6], 128, 128, 8
    $region9: #{tpu_custom_call.1} parent=1 // pred_fallthru
      _
    // Predicated region
    $region10: #{tpu_custom_call.1} parent=1 // pred_check
      _
    $region11: #{tpu_custom_call.1} parent=1 // pred_check_branch
      %51 = sbr.rel (0) target = $region13
    $region12: #{tpu_custom_call.1} parent=1 // pred_region
      _
    $region13: #{tpu_custom_call.1} parent=1 // pred_fallthru
      _
    // Predicated region
    $region14: #{tpu_custom_call.1} parent=1 // pred_check
      _
    $region15: #{tpu_custom_call.1} parent=1 // pred_check_branch
      %53 = sbr.rel (0) target = $region17
    $region16: #{tpu_custom_call.1} parent=1 // pred_region
      %s55 = ssub.s32 1024, 1024
      %56 = vsyncadd [#allocation6], %s55
      %s57 = sshll.u32 [#allocation7], 4
      %s58 = int_to_ptr.vmem [resolvable:$true] %s57
      %63 = dma.hbm_to_vmem [thread:$0]  %s3, 1024, %s58, [#allocation6], 128, 128, 8
    $region17: #{tpu_custom_call.1} parent=1 // pred_fallthru
      _
    // Predicated region
    $region18: #{tpu_custom_call.1} parent=1 // pred_check
      _
    $region19: #{tpu_custom_call.1} parent=1 // pred_check_branch
      %65 = sbr.rel (0) target = $region21
    $region20: #{tpu_custom_call.1} parent=1 // pred_region
      _
    $region21: #{tpu_custom_call.1} parent=1 // pred_fallthru
      _
    // Predicated region
    $region22: #{tpu_custom_call.1} parent=1 // pred_check
      _
    $region23: #{tpu_custom_call.1} parent=1 // pred_check_branch
      %67 = sbr.rel (0) target = $region25
    $region24: #{tpu_custom_call.1} parent=1 // pred_region
      %s69 = ssub.s32 1024, 1024
      %70 = vsyncadd [#allocation9], %s69
      %s71 = sshll.u32 [#allocation8], 4
      %s72 = int_to_ptr.vmem [resolvable:$true] %s71
      %77 = dma.hbm_to_vmem [thread:$0]  %s5, 1024, %s72, [#allocation9], 128, 128, 8
    $region25: #{tpu_custom_call.1} parent=1 // pred_fallthru
      _
    // Predicated region
    $region26: #{tpu_custom_call.1} parent=1 // pred_check
      _
    $region27: #{tpu_custom_call.1} parent=1 // pred_check_branch
      %79 = sbr.rel (0) target = $region29
    $region28: #{tpu_custom_call.1} parent=1 // pred_region
      _
    $region29: #{tpu_custom_call.1} parent=1 // pred_fallthru
      _
    // Predicated region
    $region30: #{tpu_custom_call.1} parent=1 // pred_check
      _
    $region31: #{tpu_custom_call.1} parent=1 // pred_check_branch
      %81 = sbr.rel (0) target = $region33
    $region32: #{tpu_custom_call.1} parent=1 // pred_region
      %s83 = ssub.s32 3072, 3072
      %84 = vsyncadd [#allocation9], %s83
      %s85 = sshll.u32 [#allocation10], 4
      %s86 = int_to_ptr.vmem [resolvable:$true] %s85
      %91 = dma.hbm_to_vmem [thread:$0]  %s7, 3072, %s86, [#allocation9], 384, 384, 24
    $region33: #{tpu_custom_call.1} parent=1 // pred_fallthru
      _
    // Predicated region
    $region34: #{tpu_custom_call.1} parent=1 // pred_check
      _
    $region35: #{tpu_custom_call.1} parent=1 // pred_check_branch
      %93 = sbr.rel (0) target = $region37
    $region36: #{tpu_custom_call.1} parent=1 // pred_region
      _
    $region37: #{tpu_custom_call.1} parent=1 // pred_fallthru
      _
    // Predicated region
    $region38: #{tpu_custom_call.1} parent=1 // pred_check
      _
    $region39: #{tpu_custom_call.1} parent=1 // pred_check_branch
      %95 = sbr.rel (0) target = $region41
    $region40: #{tpu_custom_call.1} parent=1 // pred_region
      %s97 = ssub.s32 2048, 2048
      %98 = vsyncadd [#allocation12], %s97
      %s99 = sshll.u32 [#allocation11], 4
      %s100 = int_to_ptr.vmem [resolvable:$true] %s99
      %105 = dma.hbm_to_vmem [thread:$0]  %s9, 2048, %s100, [#allocation12], 128, 128, 8
    $region41: #{tpu_custom_call.1} parent=1 // pred_fallthru
      _
    // Predicated region
    $region42: #{tpu_custom_call.1} parent=1 // pred_check
      _
    $region43: #{tpu_custom_call.1} parent=1 // pred_check_branch
      %107 = sbr.rel (0) target = $region45
    $region44: #{tpu_custom_call.1} parent=1 // pred_region
      _
    $region45: #{tpu_custom_call.1} parent=1 // pred_fallthru
      _
    // Predicated region
    $region46: #{tpu_custom_call.1} parent=1 // pred_check
      _
    $region47: #{tpu_custom_call.1} parent=1 // pred_check_branch
      %109 = sbr.rel (0) target = $region49
    $region48: #{tpu_custom_call.1} parent=1 // pred_region
      %s111 = ssub.s32 2048, 2048
      %112 = vsyncadd [#allocation12], %s111
      %s113 = sshll.u32 [#allocation13], 4
      %s114 = int_to_ptr.vmem [resolvable:$true] %s113
      %119 = dma.hbm_to_vmem [thread:$0]  %s11, 2048, %s114, [#allocation12], 128, 128, 8
    $region49: #{tpu_custom_call.1} parent=1 // pred_fallthru
      _
    // Predicated region
    $region50: #{tpu_custom_call.1} parent=1 // pred_check
      _
    $region51: #{tpu_custom_call.1} parent=1 // pred_check_branch
      %121 = sbr.rel (0) target = $region53
    $region52: #{tpu_custom_call.1} parent=1 // pred_region
      _
    $region53: #{tpu_custom_call.1} parent=1 // pred_fallthru
      _
    // Predicated region
    $region54: #{tpu_custom_call.1} parent=1 // pred_check
      _
    $region55: #{tpu_custom_call.1} parent=1 // pred_check_branch
      %123 = sbr.rel (0) target = $region57
    $region56: #{tpu_custom_call.1} parent=1 // pred_region
      %s125 = ssub.s32 2048, 2048
      %126 = vsyncadd [#allocation15], %s125
      %s127 = sshll.u32 [#allocation14], 4
      %s128 = int_to_ptr.vmem [resolvable:$true] %s127
      %133 = dma.hbm_to_vmem [thread:$0]  %s13, 2048, %s128, [#allocation15], 128, 128, 8
    $region57: #{tpu_custom_call.1} parent=1 // pred_fallthru
      _
    // Predicated region
    $region58: #{tpu_custom_call.1} parent=1 // pred_check
      _
    $region59: #{tpu_custom_call.1} parent=1 // pred_check_branch
      %135 = sbr.rel (0) target = $region61
    $region60: #{tpu_custom_call.1} parent=1 // pred_region
      _
    $region61: #{tpu_custom_call.1} parent=1 // pred_fallthru
      _
    // Predicated region
    $region62: #{tpu_custom_call.1} parent=1 // pred_check
      _
    $region63: #{tpu_custom_call.1} parent=1 // pred_check_branch
      %137 = sbr.rel (0) target = $region65
    $region64: #{tpu_custom_call.1} parent=1 // pred_region
      %138 = dma.done [#allocation3], 256
    $region65: #{tpu_custom_call.1} parent=1 // pred_fallthru
      _
    // Predicated region
    $region66: #{tpu_custom_call.1} parent=1 // pred_check
      _
    $region67: #{tpu_custom_call.1} parent=1 // pred_check_branch
      %140 = sbr.rel (0) target = $region69
    $region68: #{tpu_custom_call.1} parent=1 // pred_region
      %141 = dma.done [#allocation6], 512
    $region69: #{tpu_custom_call.1} parent=1 // pred_fallthru
      _
    // Predicated region
    $region70: #{tpu_custom_call.1} parent=1 // pred_check
      _
    $region71: #{tpu_custom_call.1} parent=1 // pred_check_branch
      %143 = sbr.rel (0) target = $region73
    $region72: #{tpu_custom_call.1} parent=1 // pred_region
      %144 = dma.done [#allocation6], 1024
    $region73: #{tpu_custom_call.1} parent=1 // pred_fallthru
      _
    // Predicated region
    $region74: #{tpu_custom_call.1} parent=1 // pred_check
      _
    $region75: #{tpu_custom_call.1} parent=1 // pred_check_branch
      %146 = sbr.rel (0) target = $region77
    $region76: #{tpu_custom_call.1} parent=1 // pred_region
      %147 = dma.done [#allocation9], 1024
    $region77: #{tpu_custom_call.1} parent=1 // pred_fallthru
      _
    // Predicated region
    $region78: #{tpu_custom_call.1} parent=1 // pred_check
      _
    $region79: #{tpu_custom_call.1} parent=1 // pred_check_branch
      %149 = sbr.rel (0) target = $region81
    $region80: #{tpu_custom_call.1} parent=1 // pred_region
      %150 = dma.done [#allocation9], 3072
    $region81: #{tpu_custom_call.1} parent=1 // pred_fallthru
      _
    // Predicated region
    $region82: #{tpu_custom_call.1} parent=1 // pred_check
      _
    $region83: #{tpu_custom_call.1} parent=1 // pred_check_branch
      %152 = sbr.rel (0) target = $region85
    $region84: #{tpu_custom_call.1} parent=1 // pred_region
      %153 = dma.done [#allocation12], 2048
    $region85: #{tpu_custom_call.1} parent=1 // pred_fallthru
      _
    // Predicated region
    $region86: #{tpu_custom_call.1} parent=1 // pred_check
      _
    $region87: #{tpu_custom_call.1} parent=1 // pred_check_branch
      %155 = sbr.rel (0) target = $region89
    $region88: #{tpu_custom_call.1} parent=1 // pred_region
      %156 = dma.done [#allocation12], 2048
    $region89: #{tpu_custom_call.1} parent=1 // pred_fallthru
      _
    // Predicated region
    $region90: #{tpu_custom_call.1} parent=1 // pred_check
      _
    $region91: #{tpu_custom_call.1} parent=1 // pred_check_branch
      %158 = sbr.rel (0) target = $region93
    $region92: #{tpu_custom_call.1} parent=1 // pred_region
      %159 = dma.done [#allocation15], 2048
    $region93: #{tpu_custom_call.1} parent=1 // pred_fallthru
      _
    %v160 = vld [vmem:[#allocation2] sm:$0xff]
    %v161 = vld [vmem:[#allocation2 + $0x8] sm:$0xff]
    %v162 = vld [vmem:[#allocation5] sm:$0xff]
    %v163 = vld [vmem:[#allocation5 + $0x8] sm:$0xff]
    %v164 = vld [vmem:[#allocation5 + $0x10] sm:$0xff]
    %v165 = vld [vmem:[#allocation5 + $0x18] sm:$0xff]
    %v166 = vld [vmem:[%s2] sm:$0x1]
    %v168 = vlaneseq
    %v169 = vshrl.u32 %v168, 7
    %v170 = vsub.s32 0, %v169
    %v171 = vrot.slane %v166, %v170
    %vm173 = vcmask 261120
    %v175 = vsel %vm173, %v160, 0
    %v178 = vsel %vm173, %v161, 0
    %180 = vmatprep.subr.mxu0 0.0
    %181 = vmatpush1.msra.mxu0 %v162
    %182 = vmatprep.subr.mxu0 0.0
    %183 = vmatpush1.msra.mxu0 %v163
    %184 = vmatprep.subr.mxu0 0.0
    %185 = vmatpush1.msra.mxu0 %v164
    %186 = vmatprep.subr.mxu0 0.0
    %187 = vmatpush1.msra.mxu0 %v165
    %188 = vmatprep.subr.mxu0 0.0
    %189 = vmatpush1.msra.mxu0 0.0
    %190 = vmatprep.subr.mxu0 0.0
    %191 = vmatpush1.msra.mxu0 0.0
    %192 = vmatprep.subr.mxu0 0.0
    %193 = vmatpush1.msra.mxu0 0.0
    %194 = vmatprep.subr.mxu0 0.0
    %195 = vmatpush1.msra.mxu0 0.0
    %196 = vmatprep.subr.mxu0 0.0
    %197 = vmatpush1.msra.mxu0 0.0
    %198 = vmatprep.subr.mxu0 0.0
    %199 = vmatpush1.msra.mxu0 0.0
    %200 = vmatprep.subr.mxu0 0.0
    %201 = vmatpush1.msra.mxu0 0.0
    %202 = vmatprep.subr.mxu0 0.0
    %203 = vmatpush1.msra.mxu0 0.0
    %204 = vmatprep.subr.mxu0 0.0
    %205 = vmatpush1.msra.mxu0 0.0
    %206 = vmatprep.subr.mxu0 0.0
    %207 = vmatpush1.msra.mxu0 0.0
    %208 = vmatprep.subr.mxu0 0.0
    %209 = vmatpush1.msra.mxu0 0.0
    %210 = vmatprep.subr.mxu0 0.0
    %211 = vmatpush1.msra.mxu0 0.0
    %212 = vmatprep.subr.mxu0 0.0
    %213 = vmatpush1.msra.mxu0 0.0
    %214 = vmatprep.subr.mxu0 0.0
    %215 = vmatpush1.msra.mxu0 0.0
    %216 = vmatprep.subr.mxu0 0.0
    %217 = vmatpush1.msra.mxu0 0.0
    %218 = vmatprep.subr.mxu0 0.0
    %219 = vmatpush1.msra.mxu0 0.0
    %220 = vmatprep.subr.mxu0 0.0
    %221 = vmatpush1.msra.mxu0 0.0
    %222 = vmatprep.subr.mxu0 0.0
    %223 = vmatpush1.msra.mxu0 0.0
    %224 = vmatprep.subr.mxu0 0.0
    %225 = vmatpush1.msra.mxu0 0.0
    %226 = vmatprep.subr.mxu0 0.0
    %227 = vmatpush1.msra.mxu0 0.0
    %228 = vmatprep.subr.mxu0 0.0
    %229 = vmatpush1.msra.mxu0 0.0
    %230 = vmatprep.subr.mxu0 0.0
    %231 = vmatpush1.msra.mxu0 0.0
    %232 = vmatprep.subr.mxu0 0.0
    %233 = vmatpush1.msra.mxu0 0.0
    %234 = vmatprep.subr.mxu0 0.0
    %235 = vmatpush1.msra.mxu0 0.0
    %236 = vmatprep.subr.mxu0 0.0
    %237 = vmatpush1.msra.mxu0 0.0
    %238 = vmatprep.subr.mxu0 0.0
    %239 = vmatpush1.msra.mxu0 0.0
    %240 = vmatprep.subr.mxu0 0.0
    %241 = vmatpush1.msra.mxu0 0.0
    %242 = vmatprep.subr.mxu0 0.0
    %243 = vmatpush1.msra.mxu0 0.0
    %244 = vmatprep.mubr.f32.mxu0 0.0
    %245 = vmatmul.mubr.f32.gmra.mrb[0].mxu0 %v175
    %v246 = vpop.f32.mrb[0].mxu0
    %v247 = vadd.f32 %v171, %v246
    %v248 = vpop.f32.mrb[0].mxu0
    %249 = vmatprep.mubr.f32.mxu0 0.0
    %250 = vmatmul.mubr.f32.gmra.mrb[0].mxu0 %v178
    %v251 = vpop.f32.mrb[0].mxu0
    %v252 = vadd.f32 %v171, %v251
    %v253 = vpop.f32.mrb[0].mxu0
    %254 = vdwg.mxu0
    %v255 = vmax.f32 %v247, 0.0
    %v256 = vmax.f32 %v252, 0.0
    %v257 = vld [vmem:[#allocation7] sm:$0xff]
    %v258 = vld [vmem:[#allocation7 + $0x8] sm:$0xff]
    %v259 = vld [vmem:[#allocation7 + $0x10] sm:$0xff]
    %v260 = vld [vmem:[#allocation7 + $0x18] sm:$0xff]
    %v261 = vld [vmem:[#allocation7 + $0x20] sm:$0xff]
    %v262 = vld [vmem:[#allocation7 + $0x28] sm:$0xff]
    %v263 = vld [vmem:[#allocation7 + $0x30] sm:$0xff]
    %v264 = vld [vmem:[#allocation7 + $0x38] sm:$0xff]
    %v265 = vld [vmem:[%s4] sm:$0x1]
    %v267 = vlaneseq
    %v268 = vshrl.u32 %v267, 7
    %v269 = vsub.s32 0, %v268
    %v270 = vrot.slane %v265, %v269
    %vm272 = vcmask 523264
    %v274 = vsel %vm272, %v255, 0
    %v277 = vsel %vm272, %v256, 0
    %279 = vmatprep.subr.mxu0 0.0
    %280 = vmatpush1.msra.mxu0 %v257
    %281 = vmatprep.subr.mxu0 0.0
    %282 = vmatpush1.msra.mxu0 %v258
    %283 = vmatprep.subr.mxu0 0.0
    %284 = vmatpush1.msra.mxu0 %v259
    %285 = vmatprep.subr.mxu0 0.0
    %286 = vmatpush1.msra.mxu0 %v260
    %287 = vmatprep.subr.mxu0 0.0
    %288 = vmatpush1.msra.mxu0 %v261
    %289 = vmatprep.subr.mxu0 0.0
    %290 = vmatpush1.msra.mxu0 %v262
    %291 = vmatprep.subr.mxu0 0.0
    %292 = vmatpush1.msra.mxu0 %v263
    %293 = vmatprep.subr.mxu0 0.0
    %294 = vmatpush1.msra.mxu0 %v264
    %295 = vmatprep.subr.mxu0 0.0
    %296 = vmatpush1.msra.mxu0 0.0
    %297 = vmatprep.subr.mxu0 0.0
    %298 = vmatpush1.msra.mxu0 0.0
    %299 = vmatprep.subr.mxu0 0.0
    %300 = vmatpush1.msra.mxu0 0.0
    %301 = vmatprep.subr.mxu0 0.0
    %302 = vmatpush1.msra.mxu0 0.0
    %303 = vmatprep.subr.mxu0 0.0
    %304 = vmatpush1.msra.mxu0 0.0
    %305 = vmatprep.subr.mxu0 0.0
    %306 = vmatpush1.msra.mxu0 0.0
    %307 = vmatprep.subr.mxu0 0.0
    %308 = vmatpush1.msra.mxu0 0.0
    %309 = vmatprep.subr.mxu0 0.0
    %310 = vmatpush1.msra.mxu0 0.0
    %311 = vmatprep.subr.mxu0 0.0
    %312 = vmatpush1.msra.mxu0 0.0
    %313 = vmatprep.subr.mxu0 0.0
    %314 = vmatpush1.msra.mxu0 0.0
    %315 = vmatprep.subr.mxu0 0.0
    %316 = vmatpush1.msra.mxu0 0.0
    %317 = vmatprep.subr.mxu0 0.0
    %318 = vmatpush1.msra.mxu0 0.0
    %319 = vmatprep.subr.mxu0 0.0
    %320 = vmatpush1.msra.mxu0 0.0
    %321 = vmatprep.subr.mxu0 0.0
    %322 = vmatpush1.msra.mxu0 0.0
    %323 = vmatprep.subr.mxu0 0.0
    %324 = vmatpush1.msra.mxu0 0.0
    %325 = vmatprep.subr.mxu0 0.0
    %326 = vmatpush1.msra.mxu0 0.0
    %327 = vmatprep.subr.mxu0 0.0
    %328 = vmatpush1.msra.mxu0 0.0
    %329 = vmatprep.subr.mxu0 0.0
    %330 = vmatpush1.msra.mxu0 0.0
    %331 = vmatprep.subr.mxu0 0.0
    %332 = vmatpush1.msra.mxu0 0.0
    %333 = vmatprep.subr.mxu0 0.0
    %334 = vmatpush1.msra.mxu0 0.0
    %335 = vmatprep.subr.mxu0 0.0
    %336 = vmatpush1.msra.mxu0 0.0
    %337 = vmatprep.subr.mxu0 0.0
    %338 = vmatpush1.msra.mxu0 0.0
    %339 = vmatprep.subr.mxu0 0.0
    %340 = vmatpush1.msra.mxu0 0.0
    %341 = vmatprep.subr.mxu0 0.0
    %342 = vmatpush1.msra.mxu0 0.0
    %343 = vmatprep.mubr.f32.mxu0 0.0
    %344 = vmatmul.mubr.f32.gmra.mrb[0].mxu0 %v274
    %v345 = vpop.f32.mrb[0].mxu0
    %v346 = vadd.f32 %v270, %v345
    %v347 = vpop.f32.mrb[0].mxu0
    %348 = vmatprep.mubr.f32.mxu0 0.0
    %349 = vmatmul.mubr.f32.gmra.mrb[0].mxu0 %v277
    %v350 = vpop.f32.mrb[0].mxu0
    %v351 = vadd.f32 %v270, %v350
    %v352 = vpop.f32.mrb[0].mxu0
    %353 = vdwg.mxu0
    %v354 = vmax.f32 %v346, 0.0
    %v355 = vmax.f32 %v351, 0.0
    %v356 = vld [vmem:[#allocation8] sm:$0xff]
    %v357 = vld [vmem:[#allocation8 + $0x8] sm:$0xff]
    %v358 = vld [vmem:[#allocation8 + $0x10] sm:$0xff]
    %v359 = vld [vmem:[#allocation8 + $0x18] sm:$0xff]
    %v360 = vld [vmem:[#allocation8 + $0x20] sm:$0xff]
    %v361 = vld [vmem:[#allocation8 + $0x28] sm:$0xff]
    %v362 = vld [vmem:[#allocation8 + $0x30] sm:$0xff]
    %v363 = vld [vmem:[#allocation8 + $0x38] sm:$0xff]
    %v364 = vld [vmem:[%s6] sm:$0x1]
    %v366 = vlaneseq
    %v367 = vshrl.u32 %v366, 7
    %v368 = vsub.s32 0, %v367
    %v369 = vrot.slane %v364, %v368
    %v372 = vsel %vm272, %v354, 0
    %v375 = vsel %vm272, %v355, 0
    %377 = vmatprep.subr.mxu0 0.0
    %378 = vmatpush1.msra.mxu0 %v356
    %379 = vmatprep.subr.mxu0 0.0
    %380 = vmatpush1.msra.mxu0 %v357
    %381 = vmatprep.subr.mxu0 0.0
    %382 = vmatpush1.msra.mxu0 %v358
    %383 = vmatprep.subr.mxu0 0.0
    %384 = vmatpush1.msra.mxu0 %v359
    %385 = vmatprep.subr.mxu0 0.0
    %386 = vmatpush1.msra.mxu0 %v360
    %387 = vmatprep.subr.mxu0 0.0
    %388 = vmatpush1.msra.mxu0 %v361
    %389 = vmatprep.subr.mxu0 0.0
    %390 = vmatpush1.msra.mxu0 %v362
    %391 = vmatprep.subr.mxu0 0.0
    %392 = vmatpush1.msra.mxu0 %v363
    %393 = vmatprep.subr.mxu0 0.0
    %394 = vmatpush1.msra.mxu0 0.0
    %395 = vmatprep.subr.mxu0 0.0
    %396 = vmatpush1.msra.mxu0 0.0
    %397 = vmatprep.subr.mxu0 0.0
    %398 = vmatpush1.msra.mxu0 0.0
    %399 = vmatprep.subr.mxu0 0.0
    %400 = vmatpush1.msra.mxu0 0.0
    %401 = vmatprep.subr.mxu0 0.0
    %402 = vmatpush1.msra.mxu0 0.0
    %403 = vmatprep.subr.mxu0 0.0
    %404 = vmatpush1.msra.mxu0 0.0
    %405 = vmatprep.subr.mxu0 0.0
    %406 = vmatpush1.msra.mxu0 0.0
    %407 = vmatprep.subr.mxu0 0.0
    %408 = vmatpush1.msra.mxu0 0.0
    %409 = vmatprep.subr.mxu0 0.0
    %410 = vmatpush1.msra.mxu0 0.0
    %411 = vmatprep.subr.mxu0 0.0
    %412 = vmatpush1.msra.mxu0 0.0
    %413 = vmatprep.subr.mxu0 0.0
    %414 = vmatpush1.msra.mxu0 0.0
    %415 = vmatprep.subr.mxu0 0.0
    %416 = vmatpush1.msra.mxu0 0.0
    %417 = vmatprep.subr.mxu0 0.0
    %418 = vmatpush1.msra.mxu0 0.0
    %419 = vmatprep.subr.mxu0 0.0
    %420 = vmatpush1.msra.mxu0 0.0
    %421 = vmatprep.subr.mxu0 0.0
    %422 = vmatpush1.msra.mxu0 0.0
    %423 = vmatprep.subr.mxu0 0.0
    %424 = vmatpush1.msra.mxu0 0.0
    %425 = vmatprep.subr.mxu0 0.0
    %426 = vmatpush1.msra.mxu0 0.0
    %427 = vmatprep.subr.mxu0 0.0
    %428 = vmatpush1.msra.mxu0 0.0
    %429 = vmatprep.subr.mxu0 0.0
    %430 = vmatpush1.msra.mxu0 0.0
    %431 = vmatprep.subr.mxu0 0.0
    %432 = vmatpush1.msra.mxu0 0.0
    %433 = vmatprep.subr.mxu0 0.0
    %434 = vmatpush1.msra.mxu0 0.0
    %435 = vmatprep.subr.mxu0 0.0
    %436 = vmatpush1.msra.mxu0 0.0
    %437 = vmatprep.subr.mxu0 0.0
    %438 = vmatpush1.msra.mxu0 0.0
    %439 = vmatprep.subr.mxu0 0.0
    %440 = vmatpush1.msra.mxu0 0.0
    %441 = vmatprep.mubr.f32.mxu0 0.0
    %442 = vmatmul.mubr.f32.gmra.mrb[0].mxu0 %v372
    %v443 = vpop.f32.mrb[0].mxu0
    %v444 = vadd.f32 %v369, %v443
    %v445 = vpop.f32.mrb[0].mxu0
    %446 = vmatprep.mubr.f32.mxu0 0.0
    %447 = vmatmul.mubr.f32.gmra.mrb[0].mxu0 %v375
    %v448 = vpop.f32.mrb[0].mxu0
    %v449 = vadd.f32 %v369, %v448
    %v450 = vpop.f32.mrb[0].mxu0
    %451 = vdwg.mxu0
    %v452 = vmax.f32 %v444, 0.0
    %v453 = vmax.f32 %v449, 0.0
    %v454 = vld [vmem:[#allocation10] sm:$0xff]
    %v455 = vld [vmem:[#allocation10 + $0x8] sm:$0xff]
    %v456 = vld [vmem:[#allocation10 + $0x10] sm:$0xff]
    %v457 = vld [vmem:[#allocation10 + $0x18] sm:$0xff]
    %v458 = vld [vmem:[#allocation10 + $0x20] sm:$0xff]
    %v459 = vld [vmem:[#allocation10 + $0x28] sm:$0xff]
    %v460 = vld [vmem:[#allocation10 + $0x30] sm:$0xff]
    %v461 = vld [vmem:[#allocation10 + $0x38] sm:$0xff]
    %v462 = vld [vmem:[#allocation10 + $0x40] sm:$0xff]
    %v463 = vld [vmem:[#allocation10 + $0x48] sm:$0xff]
    %v464 = vld [vmem:[#allocation10 + $0x50] sm:$0xff]
    %v465 = vld [vmem:[#allocation10 + $0x58] sm:$0xff]
    %v466 = vld [vmem:[#allocation10 + $0x60] sm:$0xff]
    %v467 = vld [vmem:[#allocation10 + $0x68] sm:$0xff]
    %v468 = vld [vmem:[#allocation10 + $0x70] sm:$0xff]
    %v469 = vld [vmem:[#allocation10 + $0x78] sm:$0xff]
    %v470 = vld [vmem:[#allocation10 + $0x80] sm:$0xff]
    %v471 = vld [vmem:[#allocation10 + $0x88] sm:$0xff]
    %v472 = vld [vmem:[#allocation10 + $0x90] sm:$0xff]
    %v473 = vld [vmem:[#allocation10 + $0x98] sm:$0xff]
    %v474 = vld [vmem:[#allocation10 + $0xa0] sm:$0xff]
    %v475 = vld [vmem:[#allocation10 + $0xa8] sm:$0xff]
    %v476 = vld [vmem:[#allocation10 + $0xb0] sm:$0xff]
    %v477 = vld [vmem:[#allocation10 + $0xb8] sm:$0xff]
    %v478 = vld [vmem:[%s8] sm:$0x7]
    %v480 = vlaneseq
    %v481 = vshrl.u32 %v480, 7
    %v482 = vsub.s32 0, %v481
    %v483 = vrot.slane %v478, %v482
    %v484 = vlaneseq
    %v485 = vshrl.u32 %v484, 7
    %v486 = vsub.s32 1, %v485
    %v487 = vrot.slane %v478, %v486
    %v488 = vlaneseq
    %v489 = vshrl.u32 %v488, 7
    %v490 = vsub.s32 2, %v489
    %v491 = vrot.slane %v478, %v490
    %v496 = vsel %vm272, %v452, 0
    %v499 = vsel %vm272, %v453, 0
    %501 = vmatprep.subr.mxu0 %v455
    %502 = vmatpush1.msra.mxu0 %v454
    %503 = vmatprep.subr.mxu0 %v458
    %504 = vmatpush1.msra.mxu0 %v457
    %505 = vmatprep.subr.mxu0 %v461
    %506 = vmatpush1.msra.mxu0 %v460
    %507 = vmatprep.subr.mxu0 %v464
    %508 = vmatpush1.msra.mxu0 %v463
    %509 = vmatprep.subr.mxu0 %v467
    %510 = vmatpush1.msra.mxu0 %v466
    %511 = vmatprep.subr.mxu0 %v470
    %512 = vmatpush1.msra.mxu0 %v469
    %513 = vmatprep.subr.mxu0 %v473
    %514 = vmatpush1.msra.mxu0 %v472
    %515 = vmatprep.subr.mxu0 %v476
    %516 = vmatpush1.msra.mxu0 %v475
    %517 = vmatprep.subr.mxu0 0.0
    %518 = vmatpush1.msra.mxu0 0.0
    %519 = vmatprep.subr.mxu0 0.0
    %520 = vmatpush1.msra.mxu0 0.0
    %521 = vmatprep.subr.mxu0 0.0
    %522 = vmatpush1.msra.mxu0 0.0
    %523 = vmatprep.subr.mxu0 0.0
    %524 = vmatpush1.msra.mxu0 0.0
    %525 = vmatprep.subr.mxu0 0.0
    %526 = vmatpush1.msra.mxu0 0.0
    %527 = vmatprep.subr.mxu0 0.0
    %528 = vmatpush1.msra.mxu0 0.0
    %529 = vmatprep.subr.mxu0 0.0
    %530 = vmatpush1.msra.mxu0 0.0
    %531 = vmatprep.subr.mxu0 0.0
    %532 = vmatpush1.msra.mxu0 0.0
    %533 = vmatprep.subr.mxu0 0.0
    %534 = vmatpush1.msra.mxu0 0.0
    %535 = vmatprep.subr.mxu0 0.0
    %536 = vmatpush1.msra.mxu0 0.0
    %537 = vmatprep.subr.mxu0 0.0
    %538 = vmatpush1.msra.mxu0 0.0
    %539 = vmatprep.subr.mxu0 0.0
    %540 = vmatpush1.msra.mxu0 0.0
    %541 = vmatprep.subr.mxu0 0.0
    %542 = vmatpush1.msra.mxu0 0.0
    %543 = vmatprep.subr.mxu0 0.0
    %544 = vmatpush1.msra.mxu0 0.0
    %545 = vmatprep.subr.mxu0 0.0
    %546 = vmatpush1.msra.mxu0 0.0
    %547 = vmatprep.subr.mxu0 0.0
    %548 = vmatpush1.msra.mxu0 0.0
    %549 = vmatprep.subr.mxu0 0.0
    %550 = vmatpush1.msra.mxu0 0.0
    %551 = vmatprep.subr.mxu0 0.0
    %552 = vmatpush1.msra.mxu0 0.0
    %553 = vmatprep.subr.mxu0 0.0
    %554 = vmatpush1.msra.mxu0 0.0
    %555 = vmatprep.subr.mxu0 0.0
    %556 = vmatpush1.msra.mxu0 0.0
    %557 = vmatprep.subr.mxu0 0.0
    %558 = vmatpush1.msra.mxu0 0.0
    %559 = vmatprep.subr.mxu0 0.0
    %560 = vmatpush1.msra.mxu0 0.0
    %561 = vmatprep.subr.mxu0 0.0
    %562 = vmatpush1.msra.mxu0 0.0
    %563 = vmatprep.subr.mxu0 0.0
    %564 = vmatpush1.msra.mxu0 0.0
    %565 = vmatprep.mubr.f32.mxu0 0.0
    %566 = vmatmul.mubr.f32.gmra.mrb[0].mxu0 %v496
    %v567 = vpop.f32.mrb[0].mxu0
    %v568 = vadd.f32 %v483, %v567
    %v569 = vpop.f32.mrb[0].mxu0
    %v570 = vadd.f32 %v487, %v569
    %571 = vmatprep.mubr.f32.mxu0 0.0
    %572 = vmatmul.mubr.f32.gmra.mrb[0].mxu0 %v499
    %v573 = vpop.f32.mrb[0].mxu0
    %v574 = vadd.f32 %v483, %v573
    %v575 = vpop.f32.mrb[0].mxu0
    %v576 = vadd.f32 %v487, %v575
    %577 = vdwg.mxu0
    %578 = vmatprep.subr.mxu0 0.0
    %579 = vmatpush1.msra.mxu0 %v456
    %580 = vmatprep.subr.mxu0 0.0
    %581 = vmatpush1.msra.mxu0 %v459
    %582 = vmatprep.subr.mxu0 0.0
    %583 = vmatpush1.msra.mxu0 %v462
    %584 = vmatprep.subr.mxu0 0.0
    %585 = vmatpush1.msra.mxu0 %v465
    %586 = vmatprep.subr.mxu0 0.0
    %587 = vmatpush1.msra.mxu0 %v468
    %588 = vmatprep.subr.mxu0 0.0
    %589 = vmatpush1.msra.mxu0 %v471
    %590 = vmatprep.subr.mxu0 0.0
    %591 = vmatpush1.msra.mxu0 %v474
    %592 = vmatprep.subr.mxu0 0.0
    %593 = vmatpush1.msra.mxu0 %v477
    %594 = vmatprep.subr.mxu0 0.0
    %595 = vmatpush1.msra.mxu0 0.0
    %596 = vmatprep.subr.mxu0 0.0
    %597 = vmatpush1.msra.mxu0 0.0
    %598 = vmatprep.subr.mxu0 0.0
    %599 = vmatpush1.msra.mxu0 0.0
    %600 = vmatprep.subr.mxu0 0.0
    %601 = vmatpush1.msra.mxu0 0.0
    %602 = vmatprep.subr.mxu0 0.0
    %603 = vmatpush1.msra.mxu0 0.0
    %604 = vmatprep.subr.mxu0 0.0
    %605 = vmatpush1.msra.mxu0 0.0
    %606 = vmatprep.subr.mxu0 0.0
    %607 = vmatpush1.msra.mxu0 0.0
    %608 = vmatprep.subr.mxu0 0.0
    %609 = vmatpush1.msra.mxu0 0.0
    %610 = vmatprep.subr.mxu0 0.0
    %611 = vmatpush1.msra.mxu0 0.0
    %612 = vmatprep.subr.mxu0 0.0
    %613 = vmatpush1.msra.mxu0 0.0
    %614 = vmatprep.subr.mxu0 0.0
    %615 = vmatpush1.msra.mxu0 0.0
    %616 = vmatprep.subr.mxu0 0.0
    %617 = vmatpush1.msra.mxu0 0.0
    %618 = vmatprep.subr.mxu0 0.0
    %619 = vmatpush1.msra.mxu0 0.0
    %620 = vmatprep.subr.mxu0 0.0
    %621 = vmatpush1.msra.mxu0 0.0
    %622 = vmatprep.subr.mxu0 0.0
    %623 = vmatpush1.msra.mxu0 0.0
    %624 = vmatprep.subr.mxu0 0.0
    %625 = vmatpush1.msra.mxu0 0.0
    %626 = vmatprep.subr.mxu0 0.0
    %627 = vmatpush1.msra.mxu0 0.0
    %628 = vmatprep.subr.mxu0 0.0
    %629 = vmatpush1.msra.mxu0 0.0
    %630 = vmatprep.subr.mxu0 0.0
    %631 = vmatpush1.msra.mxu0 0.0
    %632 = vmatprep.subr.mxu0 0.0
    %633 = vmatpush1.msra.mxu0 0.0
    %634 = vmatprep.subr.mxu0 0.0
    %635 = vmatpush1.msra.mxu0 0.0
    %636 = vmatprep.subr.mxu0 0.0
    %637 = vmatpush1.msra.mxu0 0.0
    %638 = vmatprep.subr.mxu0 0.0
    %639 = vmatpush1.msra.mxu0 0.0
    %640 = vmatprep.subr.mxu0 0.0
    %641 = vmatpush1.msra.mxu0 0.0
    %642 = vmatprep.mubr.f32.mxu0 0.0
    %643 = vmatmul.mubr.f32.gmra.mrb[0].mxu0 %v496
    %v644 = vpop.f32.mrb[0].mxu0
    %v645 = vadd.f32 %v491, %v644
    %v646 = vpop.f32.mrb[0].mxu0
    %647 = vmatprep.mubr.f32.mxu0 0.0
    %648 = vmatmul.mubr.f32.gmra.mrb[0].mxu0 %v499
    %v649 = vpop.f32.mrb[0].mxu0
    %v650 = vadd.f32 %v491, %v649
    %v651 = vpop.f32.mrb[0].mxu0
    %652 = vdwg.mxu0
    %v653 = vld [vmem:[#allocation11] sm:$0xff]
    %v654 = vld [vmem:[#allocation11 + $0x8] sm:$0xff]
    %v655 = vld [vmem:[#allocation11 + $0x10] sm:$0xff]
    %v656 = vld [vmem:[#allocation11 + $0x18] sm:$0xff]
    %v657 = vld [vmem:[#allocation11 + $0x20] sm:$0xff]
    %v658 = vld [vmem:[#allocation11 + $0x28] sm:$0xff]
    %v659 = vld [vmem:[#allocation11 + $0x30] sm:$0xff]
    %v660 = vld [vmem:[#allocation11 + $0x38] sm:$0xff]
    %v661 = vld [vmem:[#allocation11 + $0x40] sm:$0xff]
    %v662 = vld [vmem:[#allocation11 + $0x48] sm:$0xff]
    %v663 = vld [vmem:[#allocation11 + $0x50] sm:$0xff]
    %v664 = vld [vmem:[#allocation11 + $0x58] sm:$0xff]
    %v665 = vld [vmem:[#allocation11 + $0x60] sm:$0xff]
    %v666 = vld [vmem:[#allocation11 + $0x68] sm:$0xff]
    %v667 = vld [vmem:[#allocation11 + $0x70] sm:$0xff]
    %v668 = vld [vmem:[#allocation11 + $0x78] sm:$0xff]
    %v669 = vld [vmem:[%s10] sm:$0x1]
    %v671 = vlaneseq
    %v672 = vshrl.u32 %v671, 7
    %v673 = vsub.s32 0, %v672
    %v674 = vrot.slane %v669, %v673
    %676 = vmatprep.subr.mxu0 0.0
    %677 = vmatpush1.msra.mxu0 %v653
    %678 = vmatprep.subr.mxu0 0.0
    %679 = vmatpush1.msra.mxu0 %v654
    %680 = vmatprep.subr.mxu0 0.0
    %681 = vmatpush1.msra.mxu0 %v655
    %682 = vmatprep.subr.mxu0 0.0
    %683 = vmatpush1.msra.mxu0 %v656
    %684 = vmatprep.subr.mxu0 0.0
    %685 = vmatpush1.msra.mxu0 %v657
    %686 = vmatprep.subr.mxu0 0.0
    %687 = vmatpush1.msra.mxu0 %v658
    %688 = vmatprep.subr.mxu0 0.0
    %689 = vmatpush1.msra.mxu0 %v659
    %690 = vmatprep.subr.mxu0 0.0
    %691 = vmatpush1.msra.mxu0 %v660
    %692 = vmatprep.subr.mxu0 0.0
    %693 = vmatpush1.msra.mxu0 %v661
    %694 = vmatprep.subr.mxu0 0.0
    %695 = vmatpush1.msra.mxu0 %v662
    %696 = vmatprep.subr.mxu0 0.0
    %697 = vmatpush1.msra.mxu0 %v663
    %698 = vmatprep.subr.mxu0 0.0
    %699 = vmatpush1.msra.mxu0 %v664
    %700 = vmatprep.subr.mxu0 0.0
    %701 = vmatpush1.msra.mxu0 %v665
    %702 = vmatprep.subr.mxu0 0.0
    %703 = vmatpush1.msra.mxu0 %v666
    %704 = vmatprep.subr.mxu0 0.0
    %705 = vmatpush1.msra.mxu0 %v667
    %706 = vmatprep.subr.mxu0 0.0
    %707 = vmatpush1.msra.mxu0 %v668
    %708 = vmatprep.subr.mxu0 0.0
    %709 = vmatpush1.msra.mxu0 0.0
    %710 = vmatprep.subr.mxu0 0.0
    %711 = vmatpush1.msra.mxu0 0.0
    %712 = vmatprep.subr.mxu0 0.0
    %713 = vmatpush1.msra.mxu0 0.0
    %714 = vmatprep.subr.mxu0 0.0
    %715 = vmatpush1.msra.mxu0 0.0
    %716 = vmatprep.subr.mxu0 0.0
    %717 = vmatpush1.msra.mxu0 0.0
    %718 = vmatprep.subr.mxu0 0.0
    %719 = vmatpush1.msra.mxu0 0.0
    %720 = vmatprep.subr.mxu0 0.0
    %721 = vmatpush1.msra.mxu0 0.0
    %722 = vmatprep.subr.mxu0 0.0
    %723 = vmatpush1.msra.mxu0 0.0
    %724 = vmatprep.subr.mxu0 0.0
    %725 = vmatpush1.msra.mxu0 0.0
    %726 = vmatprep.subr.mxu0 0.0
    %727 = vmatpush1.msra.mxu0 0.0
    %728 = vmatprep.subr.mxu0 0.0
    %729 = vmatpush1.msra.mxu0 0.0
    %730 = vmatprep.subr.mxu0 0.0
    %731 = vmatpush1.msra.mxu0 0.0
    %732 = vmatprep.subr.mxu0 0.0
    %733 = vmatpush1.msra.mxu0 0.0
    %734 = vmatprep.subr.mxu0 0.0
    %735 = vmatpush1.msra.mxu0 0.0
    %736 = vmatprep.subr.mxu0 0.0
    %737 = vmatpush1.msra.mxu0 0.0
    %738 = vmatprep.subr.mxu0 0.0
    %739 = vmatpush1.msra.mxu0 0.0
    %740 = vmatprep.mubr.f32.mxu0 0.0
    %741 = vmatmul.mubr.f32.gmra.mrb[0].mxu0 %v568
    %v742 = vpop.f32.mrb[0].mxu0
    %v743 = vadd.f32 %v674, %v742
    %v744 = vpop.f32.mrb[0].mxu0
    %745 = vmatprep.mubr.f32.mxu0 0.0
    %746 = vmatmul.mubr.f32.gmra.mrb[0].mxu0 %v574
    %v747 = vpop.f32.mrb[0].mxu0
    %v748 = vadd.f32 %v674, %v747
    %v749 = vpop.f32.mrb[0].mxu0
    %750 = vdwg.mxu0
    %v751 = vmax.f32 %v743, 0.0
    %v752 = vmax.f32 %v748, 0.0
    %v753 = vand.u32 2147483647, %v743
    %v754 = vand.u32 2147483647, %v748
    %v755 = vsub.f32 0.0, %v753
    %v756 = vsub.f32 0.0, %v754
    %v757 = vmul.f32 %v755, 1.442695
    %v758 = vpow.pop %v757
    %v759 = vmul.f32 %v756, 1.442695
    %v760 = vpow.pop %v759
    %v761 = vadd.f32 %v758, 1.0
    %v762 = vlog2.pop %v761
    %v763 = vmul.f32 %v762, 0.6931472
    %v764 = vmul.f32 -0.5, %v758
    %v765 = vadd.f32 %v764, 1.0
    %v766 = vmul.f32 %v765, %v758
    %v767 = vand.u32 2147483647, %v758
    %vm768 = vcmp.lt.f32.partialorder %v767, 0.0004427343
    %v769 = vsel %vm768, %v766, %v763
    %v770 = vadd.f32 %v760, 1.0
    %v771 = vlog2.pop %v770
    %v772 = vmul.f32 %v771, 0.6931472
    %v773 = vmul.f32 -0.5, %v760
    %v774 = vadd.f32 %v773, 1.0
    %v775 = vmul.f32 %v774, %v760
    %v776 = vand.u32 2147483647, %v760
    %vm777 = vcmp.lt.f32.partialorder %v776, 0.0004427343
    %v778 = vsel %vm777, %v775, %v772
    %v779 = vadd.f32 %v751, %v769
    %v780 = vadd.f32 %v752, %v778
    %781 = vst [vmem:[#allocation16] sm:$0xff] %v779
    %782 = vst [vmem:[#allocation16 + $0x18] sm:$0xff] %v780
    %v783 = vld [vmem:[#allocation13] sm:$0xff]
    %v784 = vld [vmem:[#allocation13 + $0x8] sm:$0xff]
    %v785 = vld [vmem:[#allocation13 + $0x10] sm:$0xff]
    %v786 = vld [vmem:[#allocation13 + $0x18] sm:$0xff]
    %v787 = vld [vmem:[#allocation13 + $0x20] sm:$0xff]
    %v788 = vld [vmem:[#allocation13 + $0x28] sm:$0xff]
    %v789 = vld [vmem:[#allocation13 + $0x30] sm:$0xff]
    %v790 = vld [vmem:[#allocation13 + $0x38] sm:$0xff]
    %v791 = vld [vmem:[#allocation13 + $0x40] sm:$0xff]
    %v792 = vld [vmem:[#allocation13 + $0x48] sm:$0xff]
    %v793 = vld [vmem:[#allocation13 + $0x50] sm:$0xff]
    %v794 = vld [vmem:[#allocation13 + $0x58] sm:$0xff]
    %v795 = vld [vmem:[#allocation13 + $0x60] sm:$0xff]
    %v796 = vld [vmem:[#allocation13 + $0x68] sm:$0xff]
    %v797 = vld [vmem:[#allocation13 + $0x70] sm:$0xff]
    %v798 = vld [vmem:[#allocation13 + $0x78] sm:$0xff]
    %v799 = vld [vmem:[%s12] sm:$0x1]
    %v801 = vlaneseq
    %v802 = vshrl.u32 %v801, 7
    %v803 = vsub.s32 0, %v802
    %v804 = vrot.slane %v799, %v803
    %806 = vmatprep.subr.mxu0 0.0
    %807 = vmatpush1.msra.mxu0 %v783
    %808 = vmatprep.subr.mxu0 0.0
    %809 = vmatpush1.msra.mxu0 %v784
    %810 = vmatprep.subr.mxu0 0.0
    %811 = vmatpush1.msra.mxu0 %v785
    %812 = vmatprep.subr.mxu0 0.0
    %813 = vmatpush1.msra.mxu0 %v786
    %814 = vmatprep.subr.mxu0 0.0
    %815 = vmatpush1.msra.mxu0 %v787
    %816 = vmatprep.subr.mxu0 0.0
    %817 = vmatpush1.msra.mxu0 %v788
    %818 = vmatprep.subr.mxu0 0.0
    %819 = vmatpush1.msra.mxu0 %v789
    %820 = vmatprep.subr.mxu0 0.0
    %821 = vmatpush1.msra.mxu0 %v790
    %822 = vmatprep.subr.mxu0 0.0
    %823 = vmatpush1.msra.mxu0 %v791
    %824 = vmatprep.subr.mxu0 0.0
    %825 = vmatpush1.msra.mxu0 %v792
    %826 = vmatprep.subr.mxu0 0.0
    %827 = vmatpush1.msra.mxu0 %v793
    %828 = vmatprep.subr.mxu0 0.0
    %829 = vmatpush1.msra.mxu0 %v794
    %830 = vmatprep.subr.mxu0 0.0
    %831 = vmatpush1.msra.mxu0 %v795
    %832 = vmatprep.subr.mxu0 0.0
    %833 = vmatpush1.msra.mxu0 %v796
    %834 = vmatprep.subr.mxu0 0.0
    %835 = vmatpush1.msra.mxu0 %v797
    %836 = vmatprep.subr.mxu0 0.0
    %837 = vmatpush1.msra.mxu0 %v798
    %838 = vmatprep.subr.mxu0 0.0
    %839 = vmatpush1.msra.mxu0 0.0
    %840 = vmatprep.subr.mxu0 0.0
    %841 = vmatpush1.msra.mxu0 0.0
    %842 = vmatprep.subr.mxu0 0.0
    %843 = vmatpush1.msra.mxu0 0.0
    %844 = vmatprep.subr.mxu0 0.0
    %845 = vmatpush1.msra.mxu0 0.0
    %846 = vmatprep.subr.mxu0 0.0
    %847 = vmatpush1.msra.mxu0 0.0
    %848 = vmatprep.subr.mxu0 0.0
    %849 = vmatpush1.msra.mxu0 0.0
    %850 = vmatprep.subr.mxu0 0.0
    %851 = vmatpush1.msra.mxu0 0.0
    %852 = vmatprep.subr.mxu0 0.0
    %853 = vmatpush1.msra.mxu0 0.0
    %854 = vmatprep.subr.mxu0 0.0
    %855 = vmatpush1.msra.mxu0 0.0
    %856 = vmatprep.subr.mxu0 0.0
    %857 = vmatpush1.msra.mxu0 0.0
    %858 = vmatprep.subr.mxu0 0.0
    %859 = vmatpush1.msra.mxu0 0.0
    %860 = vmatprep.subr.mxu0 0.0
    %861 = vmatpush1.msra.mxu0 0.0
    %862 = vmatprep.subr.mxu0 0.0
    %863 = vmatpush1.msra.mxu0 0.0
    %864 = vmatprep.subr.mxu0 0.0
    %865 = vmatpush1.msra.mxu0 0.0
    %866 = vmatprep.subr.mxu0 0.0
    %867 = vmatpush1.msra.mxu0 0.0
    %868 = vmatprep.subr.mxu0 0.0
    %869 = vmatpush1.msra.mxu0 0.0
    %870 = vmatprep.mubr.f32.mxu0 0.0
    %871 = vmatmul.mubr.f32.gmra.mrb[0].mxu0 %v570
    %v872 = vpop.f32.mrb[0].mxu0
    %v873 = vadd.f32 %v804, %v872
    %v874 = vpop.f32.mrb[0].mxu0
    %875 = vmatprep.mubr.f32.mxu0 0.0
    %876 = vmatmul.mubr.f32.gmra.mrb[0].mxu0 %v576
    %v877 = vpop.f32.mrb[0].mxu0
    %v878 = vadd.f32 %v804, %v877
    %v879 = vpop.f32.mrb[0].mxu0
    %880 = vdwg.mxu0
    %v881 = vmax.f32 %v873, 0.0
    %v882 = vmax.f32 %v878, 0.0
    %v883 = vand.u32 2147483647, %v873
    %v884 = vand.u32 2147483647, %v878
    %v885 = vsub.f32 0.0, %v883
    %v886 = vsub.f32 0.0, %v884
    %v887 = vmul.f32 %v885, 1.442695
    %v888 = vpow.pop %v887
    %v889 = vmul.f32 %v886, 1.442695
    %v890 = vpow.pop %v889
    %v891 = vadd.f32 %v888, 1.0
    %v892 = vlog2.pop %v891
    %v893 = vmul.f32 %v892, 0.6931472
    %v894 = vmul.f32 -0.5, %v888
    %v895 = vadd.f32 %v894, 1.0
    %v896 = vmul.f32 %v895, %v888
    %v897 = vand.u32 2147483647, %v888
    %vm898 = vcmp.lt.f32.partialorder %v897, 0.0004427343
    %v899 = vsel %vm898, %v896, %v893
    %v900 = vadd.f32 %v890, 1.0
    %v901 = vlog2.pop %v900
    %v902 = vmul.f32 %v901, 0.6931472
    %v903 = vmul.f32 -0.5, %v890
    %v904 = vadd.f32 %v903, 1.0
    %v905 = vmul.f32 %v904, %v890
    %v906 = vand.u32 2147483647, %v890
    %vm907 = vcmp.lt.f32.partialorder %v906, 0.0004427343
    %v908 = vsel %vm907, %v905, %v902
    %v909 = vadd.f32 %v881, %v899
    %v910 = vadd.f32 %v882, %v908
    %911 = vst [vmem:[#allocation16 + $0x8] sm:$0xff] %v909
    %912 = vst [vmem:[#allocation16 + $0x20] sm:$0xff] %v910
    %v913 = vld [vmem:[#allocation14] sm:$0xff]
    %v914 = vld [vmem:[#allocation14 + $0x8] sm:$0xff]
    %v915 = vld [vmem:[#allocation14 + $0x10] sm:$0xff]
    %v916 = vld [vmem:[#allocation14 + $0x18] sm:$0xff]
    %v917 = vld [vmem:[#allocation14 + $0x20] sm:$0xff]
    %v918 = vld [vmem:[#allocation14 + $0x28] sm:$0xff]
    %v919 = vld [vmem:[#allocation14 + $0x30] sm:$0xff]
    %v920 = vld [vmem:[#allocation14 + $0x38] sm:$0xff]
    %v921 = vld [vmem:[#allocation14 + $0x40] sm:$0xff]
    %v922 = vld [vmem:[#allocation14 + $0x48] sm:$0xff]
    %v923 = vld [vmem:[#allocation14 + $0x50] sm:$0xff]
    %v924 = vld [vmem:[#allocation14 + $0x58] sm:$0xff]
    %v925 = vld [vmem:[#allocation14 + $0x60] sm:$0xff]
    %v926 = vld [vmem:[#allocation14 + $0x68] sm:$0xff]
    %v927 = vld [vmem:[#allocation14 + $0x70] sm:$0xff]
    %v928 = vld [vmem:[#allocation14 + $0x78] sm:$0xff]
    %v929 = vld [vmem:[%s14] sm:$0x1]
    %v931 = vlaneseq
    %v932 = vshrl.u32 %v931, 7
    %v933 = vsub.s32 0, %v932
    %v934 = vrot.slane %v929, %v933
    %936 = vmatprep.subr.mxu0 0.0
    %937 = vmatpush1.msra.mxu0 %v913
    %938 = vmatprep.subr.mxu0 0.0
    %939 = vmatpush1.msra.mxu0 %v914
    %940 = vmatprep.subr.mxu0 0.0
    %941 = vmatpush1.msra.mxu0 %v915
    %942 = vmatprep.subr.mxu0 0.0
    %943 = vmatpush1.msra.mxu0 %v916
    %944 = vmatprep.subr.mxu0 0.0
    %945 = vmatpush1.msra.mxu0 %v917
    %946 = vmatprep.subr.mxu0 0.0
    %947 = vmatpush1.msra.mxu0 %v918
    %948 = vmatprep.subr.mxu0 0.0
    %949 = vmatpush1.msra.mxu0 %v919
    %950 = vmatprep.subr.mxu0 0.0
    %951 = vmatpush1.msra.mxu0 %v920
    %952 = vmatprep.subr.mxu0 0.0
    %953 = vmatpush1.msra.mxu0 %v921
    %954 = vmatprep.subr.mxu0 0.0
    %955 = vmatpush1.msra.mxu0 %v922
    %956 = vmatprep.subr.mxu0 0.0
    %957 = vmatpush1.msra.mxu0 %v923
    %958 = vmatprep.subr.mxu0 0.0
    %959 = vmatpush1.msra.mxu0 %v924
    %960 = vmatprep.subr.mxu0 0.0
    %961 = vmatpush1.msra.mxu0 %v925
    %962 = vmatprep.subr.mxu0 0.0
    %963 = vmatpush1.msra.mxu0 %v926
    %964 = vmatprep.subr.mxu0 0.0
    %965 = vmatpush1.msra.mxu0 %v927
    %966 = vmatprep.subr.mxu0 0.0
    %967 = vmatpush1.msra.mxu0 %v928
    %968 = vmatprep.subr.mxu0 0.0
    %969 = vmatpush1.msra.mxu0 0.0
    %970 = vmatprep.subr.mxu0 0.0
    %971 = vmatpush1.msra.mxu0 0.0
    %972 = vmatprep.subr.mxu0 0.0
    %973 = vmatpush1.msra.mxu0 0.0
    %974 = vmatprep.subr.mxu0 0.0
    %975 = vmatpush1.msra.mxu0 0.0
    %976 = vmatprep.subr.mxu0 0.0
    %977 = vmatpush1.msra.mxu0 0.0
    %978 = vmatprep.subr.mxu0 0.0
    %979 = vmatpush1.msra.mxu0 0.0
    %980 = vmatprep.subr.mxu0 0.0
    %981 = vmatpush1.msra.mxu0 0.0
    %982 = vmatprep.subr.mxu0 0.0
    %983 = vmatpush1.msra.mxu0 0.0
    %984 = vmatprep.subr.mxu0 0.0
    %985 = vmatpush1.msra.mxu0 0.0
    %986 = vmatprep.subr.mxu0 0.0
    %987 = vmatpush1.msra.mxu0 0.0
    %988 = vmatprep.subr.mxu0 0.0
    %989 = vmatpush1.msra.mxu0 0.0
    %990 = vmatprep.subr.mxu0 0.0
    %991 = vmatpush1.msra.mxu0 0.0
    %992 = vmatprep.subr.mxu0 0.0
    %993 = vmatpush1.msra.mxu0 0.0
    %994 = vmatprep.subr.mxu0 0.0
    %995 = vmatpush1.msra.mxu0 0.0
    %996 = vmatprep.subr.mxu0 0.0
    %997 = vmatpush1.msra.mxu0 0.0
    %998 = vmatprep.subr.mxu0 0.0
    %999 = vmatpush1.msra.mxu0 0.0
    %1000 = vmatprep.mubr.f32.mxu0 0.0
    %1001 = vmatmul.mubr.f32.gmra.mrb[0].mxu0 %v645
    %v1002 = vpop.f32.mrb[0].mxu0
    %v1003 = vadd.f32 %v934, %v1002
    %v1004 = vpop.f32.mrb[0].mxu0
    %1005 = vmatprep.mubr.f32.mxu0 0.0
    %1006 = vmatmul.mubr.f32.gmra.mrb[0].mxu0 %v650
    %v1007 = vpop.f32.mrb[0].mxu0
    %v1008 = vadd.f32 %v934, %v1007
    %v1009 = vpop.f32.mrb[0].mxu0
    %1010 = vdwg.mxu0
    %v1011 = vmul.f32 %v1003, 10.0
    %v1012 = vmul.f32 %v1008, 10.0
    %v1013 = vadd.f32 %v1011, 4.0
    %v1014 = vadd.f32 %v1012, 4.0
    %1015 = vst [vmem:[#allocation16 + $0x10] sm:$0xff] %v1013
    %1016 = vst [vmem:[#allocation16 + $0x28] sm:$0xff] %v1014
    // Predicated region
    $region94: #{tpu_custom_call.1} parent=1 // pred_check
      _
    $region95: #{tpu_custom_call.1} parent=1 // pred_check_branch
      %1018 = sbr.rel (0) target = $region97
    $region96: #{tpu_custom_call.1} parent=1 // pred_region
      %s1020 = ssub.s32 768, 768
      %1021 = vsyncadd [#allocation4], %s1020
      %s1022 = sshll.u32 [#allocation16], 4
      %s1023 = int_to_ptr.vmem [resolvable:$true] %s1022
      %1028 = dma.vmem_to_hbm [thread:$0]  %s1023, 768, %s15, [#allocation4], 384, 384, 24
    $region97: #{tpu_custom_call.1} parent=1 // pred_fallthru
      _
    // Predicated region
    $region98: #{tpu_custom_call.1} parent=1 // pred_check
      _
    $region99: #{tpu_custom_call.1} parent=1 // pred_check_branch
      %1030 = sbr.rel (0) target = $region101
    $region100: #{tpu_custom_call.1} parent=1 // pred_region
      %1031 = dma.done [#allocation4], 768
    $region101: #{tpu_custom_call.1} parent=1 // pred_fallthru
      _
    %1032 = vsyncpa [#allocation3], 1
    %1033 = vsyncpa [#allocation6], 1
    %1034 = vsyncpa [#allocation9], 1
    %1035 = vsyncpa [#allocation12], 1
    %1036 = vsyncpa [#allocation15], 1
    %1037 = vsyncpa [#allocation4], 1

</llo_original>
